<compile_context>
chip_gen: v6e
topology: v6e:2x2x1
jax: 0.10.0
libtpu: 0.0.40
codegen_flags: <defaults>
</compile_context>

<pallas_src>
import jax
import jax.numpy as jnp
from jax import lax
from jax.experimental import pallas as pl
from jax.experimental.pallas import tpu as pltpu


# Target ~2 MiB f32 blocks (elements per block).
_TARGET_BLOCK_ELEMS = 512 * 1024


def _modrelu_kernel(x_ref, o_ref):
    """x_ref: (block_rows, cols) tile of the flattened input.

    Real/imag of each complex element sit in adjacent lanes (2k, 2k+1).
    """
    x = x_ref[...].astype(jnp.float32)
    cols = x.shape[-1]
    sq = x * x

    # Partner lane of lane i is i^1 (2k <-> 2k+1).  Build partner squares with
    # two XLU rotations and a parity select (XLU/VPU slots, no extra HBM).
    right = pltpu.roll(sq, shift=cols - 1, axis=1)   # right[i] = sq[(i+1) % cols]
    left = pltpu.roll(sq, shift=1, axis=1)           # left[i]  = sq[(i-1) % cols]
    lane = lax.broadcasted_iota(jnp.int32, x.shape, 1)
    is_even = (lane & 1) == 0
    partner_sq = jnp.where(is_even, right, left)

    # Mirror the reference exactly: norm = sqrt(re^2 + im^2) + 1e-5 (the torch
    # module hard-codes 1e-5 and ignores its eps argument).
    norm = jnp.sqrt(sq + partner_sq) + jnp.float32(1e-05)
    # relu(norm): norm > 0 always, kept to mirror the reference op-for-op.
    activated = jnp.maximum(norm, jnp.float32(0.0))
    # One exact reciprocal + multiply per element (approx=True would run on the
    # EUP for ~free, but the kernel is HBM-bound so we keep exact numerics).
    phase = x * pl.reciprocal(norm, approx=False)
    o_ref[...] = (activated * phase).astype(o_ref.dtype)


def modrelu(x, eps=1e-05, *, block_rows=None):
    """ModReLU forward.  x.shape = [a, ..., b, 2] (real/imag in last dim).

    NOTE: like the PyTorch reference, `eps` is accepted but the literal 1e-05
    inside the forward is what is actually added to the norm.
    """
    assert x.shape[-1] == 2, "last dim must hold (real, imag)"
    orig_shape = x.shape
    orig_dtype = x.dtype
    n = x.size                      # even (last dim is 2)
    flat = x.reshape(-1)            # metadata-only reshape

    # --- choose a lane-dense layout: cols is a multiple of 256 (= 2*128) so the
    #     lane dim is 128-aligned AND (re, im) pairs never straddle a row.
    cols = None
    for c in (2048, 1024, 512, 256):
        if n % c == 0:
            cols = c
            break
    pad = 0
    if cols is None:
        cols = 256
        pad = (-n) % cols
        flat = jnp.pad(flat, (0, pad))        # uncommon path: one extra copy
    rows = (n + pad) // cols
    x2 = flat.reshape(rows, cols)

    # --- row tiling: ~2 MiB blocks, second-minor dim a multiple of 8 (or the
    #     full extent).  Partial tail blocks are handled by a cdiv grid.
    if block_rows is None:
        block_rows = _TARGET_BLOCK_ELEMS // cols
    block_rows = max(1, min(int(block_rows), rows))
    if block_rows != rows and block_rows % 8 != 0:
        block_rows = max(8, (block_rows // 8) * 8)
        if block_rows > rows:
            block_rows = rows
    grid = (pl.cdiv(rows, block_rows),)

    blk = pl.BlockSpec((block_rows, cols), lambda i: (i, 0))
    out2 = pl.pallas_call(
        _modrelu_kernel,
        out_shape=jax.ShapeDtypeStruct((rows, cols), orig_dtype),
        grid_spec=pltpu.PrefetchScalarGridSpec(
            num_scalar_prefetch=0,
            grid=grid,
            in_specs=[blk],
            out_specs=blk,
        ),
        compiler_params=pltpu.CompilerParams(
            dimension_semantics=("parallel",),
        ),
    )(x2)

    out_flat = out2.reshape(-1)
    if pad:
        out_flat = out_flat[:n]
    return out_flat.reshape(orig_shape)


def _modrelu_ref(x):
    x_re, x_im = x[..., 0], x[..., 1]
    norm = jnp.sqrt(x_re ** 2 + x_im ** 2) + 1e-05
    phase_re, phase_im = x_re / norm, x_im / norm
    activated = jnp.maximum(norm, 0.0)
    return jnp.stack([activated * phase_re, activated * phase_im], axis=-1)


if __name__ == "__main__":
    key = jax.random.PRNGKey(0)

    checks = [
        # (shape, block_rows override)
        ((2, 8, 32, 2), None),     # single full-array block (cols=1024, rows=1)
        ((3, 10, 128, 2), 8),      # multi-block grid + masked tail block
        ((3, 7, 11, 2), None),     # odd size -> padded lane-dense slab
    ]
    for shape, br in checks:
        key, sub = jax.random.split(key)
        x = jax.random.normal(sub, shape, dtype=jnp.float32)
        y = modrelu(x) if br is None else modrelu(x, block_rows=br)
        y = jax.block_until_ready(y)
        y_ref = _modrelu_ref(x)
        assert y.shape == x.shape
        assert jnp.allclose(y, y_ref, atol=1e-5, rtol=1e-5), f"mismatch for {shape}"

    print("KERNEL_OK")
</pallas_src>

<mosaic_0001>
module attributes {stable_mosaic.version = 11 : i64} {
  func.func @_modrelu_kernel(%arg0: i32, %arg1: memref<1x1024xf32, #tpu.memory_space<vmem>>, %arg2: memref<1x1024xf32, #tpu.memory_space<vmem>>) attributes {dimension_semantics = [#tpu.dimension_semantics<parallel>], iteration_bounds = array<i64: 1>, scalar_prefetch = 0 : i64, scratch_operands = 0 : i64, tpu.core_type = #tpu.core_type<tc>, window_params = [{transform_indices = @transform_0, window_bounds = array<i64: 1, 1024>}, {transform_indices = @transform_1, window_bounds = array<i64: 1, 1024>}]} {
    %c0 = arith.constant 0 : index
    %c0_0 = arith.constant 0 : index
    %0 = vector.load %arg1[%c0, %c0_0] : memref<1x1024xf32, #tpu.memory_space<vmem>>, vector<1x1024xf32>
    %1 = arith.mulf %0, %0 : vector<1x1024xf32>
    %c1023_i32 = arith.constant 1023 : i32
    %2 = tpu.dynamic_rotate %1 by %c1023_i32 dim 1 : vector<1x1024xf32>, i32 -> vector<1x1024xf32>
    %c1_i32 = arith.constant 1 : i32
    %3 = tpu.dynamic_rotate %1 by %c1_i32 dim 1 : vector<1x1024xf32>, i32 -> vector<1x1024xf32>
    %4 = tpu.iota {dimensions = array<i32: 1>} : vector<1x1024xi32>
    %c1_i32_1 = arith.constant 1 : i32
    %5 = vector.broadcast %c1_i32_1 : i32 to vector<1x1024xi32>
    %6 = arith.andi %4, %5 : vector<1x1024xi32>
    %c0_i32 = arith.constant 0 : i32
    %7 = vector.broadcast %c0_i32 : i32 to vector<1x1024xi32>
    %8 = arith.cmpi eq, %6, %7 : vector<1x1024xi32>
    %9 = arith.select %8, %2, %3 : vector<1x1024xi1>, vector<1x1024xf32>
    %10 = arith.addf %1, %9 : vector<1x1024xf32>
    %11 = math.sqrt %10 : vector<1x1024xf32>
    %cst = arith.constant 9.99999974E-6 : f32
    %12 = vector.broadcast %cst : f32 to vector<1x1024xf32>
    %13 = arith.addf %11, %12 : vector<1x1024xf32>
    %cst_2 = arith.constant 0.000000e+00 : f32
    %14 = vector.broadcast %cst_2 : f32 to vector<1x1024xf32>
    %15 = arith.maximumf %13, %14 : vector<1x1024xf32>
    %16 = tpu.reciprocal %13 : vector<1x1024xf32> -> vector<1x1024xf32>
    %17 = arith.mulf %0, %16 : vector<1x1024xf32>
    %18 = arith.mulf %15, %17 : vector<1x1024xf32>
    %c0_3 = arith.constant 0 : index
    %c0_4 = arith.constant 0 : index
    %19 = vector.load %arg2[%c0_3, %c0_4] : memref<1x1024xf32, #tpu.memory_space<vmem>>, vector<1x1024xf32>
    tpu.vector_store %arg2[%c0_3, %c0_4], %18 {strides = array<i32>} : memref<1x1024xf32, #tpu.memory_space<vmem>>, vector<1x1024xf32>,
    return
  }
  func.func @transform_0(%arg0: i32) -> (i32, i32) {
    %c0_i32 = arith.constant 0 : i32
    %c0_i32_0 = arith.constant 0 : i32
    return %arg0, %c0_i32 : i32, i32
  }
  func.func @transform_1(%arg0: i32) -> (i32, i32) {
    %c0_i32 = arith.constant 0 : i32
    %c0_i32_0 = arith.constant 0 : i32
    return %arg0, %c0_i32 : i32, i32
  }
}

</mosaic_0001>

<llo_original>
// kernel: tpu_custom_call.1
$region0: #{tpu_custom_call.1}
  #allocation0 [shape = 'u32[]', space=smem, size = 0x4, offset = 0x4, fixed_abs, tag = 'smem constant byte address 0x4 - core index']
  #allocation1 [shape = 'u32[144,128]{1,0:T(1,128)}', space=vmem, size = 0x12000, scoped, tag = 'internal scratch']
  %s0 = inlined_call_operand.hbm [shape: f32[1,1024], index: 0, kind: input, shape index: {}]
  %s1 = inlined_call_operand.hbm [shape: f32[1,1024], index: 1, kind: output, shape index: {}]
  %s2 = sld [smem:[#allocation0]]
  $region18: #{tpu_custom_call.1} parent=0
    _
  %s4 = ssub.s32 1, %s2
  %s5 = scalar_select 0, %s4, %s2
  $region1: #{tpu_custom_call.1} parent=0
    #allocation2 [shape = 'u8[4096]{0}', space=vmem, size = 0x1000, scoped, tag = 'input window, operand 0, single buffered']
    #allocation3 [shape = 's32[1]{0}', space=sflag, size = 0x4, scoped, tag = 'scoped memory for tpu_custom_call.1']
    #allocation4 [shape = 's32[1]{0}', space=sflag, size = 0x4, scoped, tag = 'scoped memory for tpu_custom_call.1']
    #allocation5 [shape = 'u8[4096]{0}', space=vmem, size = 0x1000, scoped, tag = 'output window, operand 0, single buffered']
    %6 = vsyncpa [#allocation3], 0
    %7 = vsyncpa [#allocation4], 0
    // Predicated region
    $region2: #{tpu_custom_call.1} parent=1 // pred_check
      _
    $region3: #{tpu_custom_call.1} parent=1 // pred_check_branch
      %9 = sbr.rel (0) target = $region5
    $region4: #{tpu_custom_call.1} parent=1 // pred_region
      %s11 = ssub.s32 128, 128
      %12 = vsyncadd [#allocation3], %s11
      %s14 = sshll.u32 [#allocation2], 4
      %s15 = int_to_ptr.vmem [resolvable:$true] %s14
      %17 = dma.hbm_to_vmem [thread:$0]  %s0, 128, %s15, [#allocation3]
    $region5: #{tpu_custom_call.1} parent=1 // pred_fallthru
      _
    // Predicated region
    $region6: #{tpu_custom_call.1} parent=1 // pred_check
      _
    $region7: #{tpu_custom_call.1} parent=1 // pred_check_branch
      %19 = sbr.rel (0) target = $region9
    $region8: #{tpu_custom_call.1} parent=1 // pred_region
      %20 = dma.done [#allocation3], 128
    $region9: #{tpu_custom_call.1} parent=1 // pred_fallthru
      _
    %v21 = vld [vmem:[#allocation2] sm:$0xff]
    %v22 = vmul.f32 %v21, %v21
    %v24 = vlaneseq
    %v25 = vshrl.u32 %v24, 7
    %v26 = vsub.s32 0, %v25
    %v27 = vrot.slane %v22, %v26
    %v28 = vlaneseq
    %v29 = vshrl.u32 %v28, 7
    %v30 = vsub.s32 1, %v29
    %v31 = vrot.slane %v22, %v30
    %v32 = vlaneseq
    %v33 = vshrl.u32 %v32, 7
    %v34 = vsub.s32 2, %v33
    %v35 = vrot.slane %v22, %v34
    %v36 = vlaneseq
    %v37 = vshrl.u32 %v36, 7
    %v38 = vsub.s32 3, %v37
    %v39 = vrot.slane %v22, %v38
    %v40 = vlaneseq
    %v41 = vshrl.u32 %v40, 7
    %v42 = vsub.s32 4, %v41
    %v43 = vrot.slane %v22, %v42
    %v44 = vlaneseq
    %v45 = vshrl.u32 %v44, 7
    %v46 = vsub.s32 5, %v45
    %v47 = vrot.slane %v22, %v46
    %v48 = vlaneseq
    %v49 = vshrl.u32 %v48, 7
    %v50 = vsub.s32 6, %v49
    %v51 = vrot.slane %v22, %v50
    %v52 = vlaneseq
    %v53 = vshrl.u32 %v52, 7
    %v54 = vsub.s32 7, %v53
    %v55 = vrot.slane %v22, %v54
    %64 = vrot.lane.b32.xlu0 %v27, 127
    %v65 = vpop.permute.xlu0 %64
    %66 = vrot.lane.b32.xlu0 %v31, 127
    %v67 = vpop.permute.xlu0 %66
    %68 = vrot.lane.b32.xlu0 %v35, 127
    %v69 = vpop.permute.xlu0 %68
    %70 = vrot.lane.b32.xlu0 %v39, 127
    %v71 = vpop.permute.xlu0 %70
    %72 = vrot.lane.b32.xlu0 %v43, 127
    %v73 = vpop.permute.xlu0 %72
    %74 = vrot.lane.b32.xlu0 %v47, 127
    %v75 = vpop.permute.xlu0 %74
    %76 = vrot.lane.b32.xlu0 %v51, 127
    %v77 = vpop.permute.xlu0 %76
    %78 = vrot.lane.b32.xlu0 %v55, 127
    %v79 = vpop.permute.xlu0 %78
    %v80 = vlaneseq
    %v81 = vand.u32 %v80, 127
    %vm82 = vcmp.lt.s32.totalorder %v81, 127
    %v83 = vsel %vm82, %v77, %v79
    %v84 = vsel %vm82, %v75, %v77
    %v85 = vsel %vm82, %v73, %v75
    %v86 = vsel %vm82, %v71, %v73
    %v87 = vsel %vm82, %v69, %v71
    %v88 = vsel %vm82, %v67, %v69
    %v89 = vsel %vm82, %v65, %v67
    %v90 = vsel %vm82, %v79, %v65
    %91 = vrot.lane.b32.xlu0 %v27, 1
    %v92 = vpop.permute.xlu0 %91
    %93 = vrot.lane.b32.xlu0 %v31, 1
    %v94 = vpop.permute.xlu0 %93
    %95 = vrot.lane.b32.xlu0 %v35, 1
    %v96 = vpop.permute.xlu0 %95
    %97 = vrot.lane.b32.xlu0 %v39, 1
    %v98 = vpop.permute.xlu0 %97
    %99 = vrot.lane.b32.xlu0 %v43, 1
    %v100 = vpop.permute.xlu0 %99
    %101 = vrot.lane.b32.xlu0 %v47, 1
    %v102 = vpop.permute.xlu0 %101
    %103 = vrot.lane.b32.xlu0 %v51, 1
    %v104 = vpop.permute.xlu0 %103
    %105 = vrot.lane.b32.xlu0 %v55, 1
    %v106 = vpop.permute.xlu0 %105
    %vm107 = vcmp.lt.s32.totalorder %v81, 1
    %v108 = vsel %vm107, %v104, %v106
    %v109 = vsel %vm107, %v102, %v104
    %v110 = vsel %vm107, %v100, %v102
    %v111 = vsel %vm107, %v98, %v100
    %v112 = vsel %vm107, %v96, %v98
    %v113 = vsel %vm107, %v94, %v96
    %v114 = vsel %vm107, %v92, %v94
    %v115 = vsel %vm107, %v106, %v92
    %v116 = vadd.s32 %v81, 128
    %v117 = vadd.s32 %v81, 256
    %v118 = vadd.s32 %v81, 384
    %v119 = vadd.s32 %v81, 512
    %v120 = vadd.s32 %v81, 640
    %v121 = vadd.s32 %v81, 768
    %v122 = vadd.s32 %v81, 896
    %v123 = vand.u32 %v81, 1
    %v124 = vand.u32 %v116, 1
    %v125 = vand.u32 %v117, 1
    %v126 = vand.u32 %v118, 1
    %v127 = vand.u32 %v119, 1
    %v128 = vand.u32 %v120, 1
    %v129 = vand.u32 %v121, 1
    %v130 = vand.u32 %v122, 1
    %vm131 = vcmp.eq.s32.totalorder %v123, 0
    %vm132 = vcmp.eq.s32.totalorder %v124, 0
    %vm133 = vcmp.eq.s32.totalorder %v125, 0
    %vm134 = vcmp.eq.s32.totalorder %v126, 0
    %vm135 = vcmp.eq.s32.totalorder %v127, 0
    %vm136 = vcmp.eq.s32.totalorder %v128, 0
    %vm137 = vcmp.eq.s32.totalorder %v129, 0
    %vm138 = vcmp.eq.s32.totalorder %v130, 0
    %v139 = vsel %vm131, %v89, %v115
    %v140 = vsel %vm132, %v88, %v114
    %v141 = vsel %vm133, %v87, %v113
    %v142 = vsel %vm134, %v86, %v112
    %v143 = vsel %vm135, %v85, %v111
    %v144 = vsel %vm136, %v84, %v110
    %v145 = vsel %vm137, %v83, %v109
    %v146 = vsel %vm138, %v90, %v108
    %v155 = vcombine.low %v139, %v140
    %v156 = vcombine.low %v141, %v142
    %v157 = vcombine.low %v143, %v144
    %v158 = vcombine.low %v145, %v146
    %v160 = vunpack.c.l.s4 1966171168
    %v161 = vunpack.c.0.s8 %v160
    %v162 = vlaneseq
    %v163 = vshrl.u32 %v162, 7
    %v164 = vsub.s32 %v161, %v163
    %v165 = vrot.slane %v155, %v164
    %v167 = vunpack.c.l.s4 1966171168
    %v168 = vunpack.c.0.s8 %v167
    %v169 = vlaneseq
    %v170 = vshrl.u32 %v169, 7
    %v171 = vsub.s32 %v168, %v170
    %v172 = vrot.slane %v156, %v171
    %v174 = vunpack.c.l.s4 1966171168
    %v175 = vunpack.c.0.s8 %v174
    %v176 = vlaneseq
    %v177 = vshrl.u32 %v176, 7
    %v178 = vsub.s32 %v175, %v177
    %v179 = vrot.slane %v157, %v178
    %v181 = vunpack.c.l.s4 1966171168
    %v182 = vunpack.c.0.s8 %v181
    %v183 = vlaneseq
    %v184 = vshrl.u32 %v183, 7
    %v185 = vsub.s32 %v182, %v184
    %v186 = vrot.slane %v158, %v185
    %v187 = vcombine.low %v165, %v172
    %v188 = vcombine.low %v179, %v186
    %v190 = vunpack.c.l.s4 1966171168
    %v191 = vunpack.c.0.s8 %v190
    %v192 = vlaneseq
    %v193 = vshrl.u32 %v192, 7
    %v194 = vsub.s32 %v191, %v193
    %v195 = vrot.slane %v187, %v194
    %v197 = vunpack.c.l.s4 1966171168
    %v198 = vunpack.c.0.s8 %v197
    %v199 = vlaneseq
    %v200 = vshrl.u32 %v199, 7
    %v201 = vsub.s32 %v198, %v200
    %v202 = vrot.slane %v188, %v201
    %v203 = vcombine.low %v195, %v202
    %v205 = vadd.f32 %v22, %v203
    %v206 = vrsqrt.pop %v205
    %v207 = vmul.f32 %v205, %v206
    %vm208 = vcmp.eq.f32.partialorder %v205, inf
    %v209 = vsel %vm208, %v205, %v207
    %vm210 = vcmp.eq.f32.partialorder %v205, 0.0
    %v211 = vand.u32 %v205, 2147483648
    %v212 = vsel %vm210, %v211, %v209
    %v213 = vadd.f32 %v212, 1e-05
    %v214 = vmax.f32 %v213, 0.0
    %v215 = vrcp.pop %v213
    %v216 = vmul.f32 %v21, %v215
    %v217 = vmul.f32 %v214, %v216
    %218 = vst [vmem:[#allocation5] sm:$0xff] %v217
    // Predicated region
    $region10: #{tpu_custom_call.1} parent=1 // pred_check
      _
    $region11: #{tpu_custom_call.1} parent=1 // pred_check_branch
      %220 = sbr.rel (0) target = $region13
    $region12: #{tpu_custom_call.1} parent=1 // pred_region
      %s222 = ssub.s32 128, 128
      %223 = vsyncadd [#allocation4], %s222
      %s225 = sshll.u32 [#allocation5], 4
      %s226 = int_to_ptr.vmem [resolvable:$true] %s225
      %228 = dma.vmem_to_hbm [thread:$0]  %s226, 128, %s1, [#allocation4]
    $region13: #{tpu_custom_call.1} parent=1 // pred_fallthru
      _
    // Predicated region
    $region14: #{tpu_custom_call.1} parent=1 // pred_check
      _
    $region15: #{tpu_custom_call.1} parent=1 // pred_check_branch
      %230 = sbr.rel (0) target = $region17
    $region16: #{tpu_custom_call.1} parent=1 // pred_region
      %231 = dma.done [#allocation4], 128
    $region17: #{tpu_custom_call.1} parent=1 // pred_fallthru
      _
    %232 = vsyncpa [#allocation3], 1
    %233 = vsyncpa [#allocation4], 1

</llo_original>
